<compile_context>
chip_gen: v6e
topology: v6e:2x2x1
jax: 0.10.0
libtpu: 0.0.40
codegen_flags: <defaults>
</compile_context>

<pallas_src>
import functools

import jax
import jax.numpy as jnp
from jax.experimental import pallas as pl
from jax.experimental.pallas import tpu as pltpu  # noqa: F401  (TPU backend)


def _round_up(x: int, m: int) -> int:
    return (x + m - 1) // m * m


def _fused_mlp_kernel(*refs, num_layers: int):
    """refs = (x, w1, b1, w2, b2, ..., wL, bL, out). All VMEM-resident.

    out = (... ReLU(ReLU(x@w1+b1)@w2+b2) ...)@wL + bL
    Dots use bf16 operands on the MXU with f32 accumulation; bias/ReLU in f32.
    Intermediate activations never leave VMEM; the layer loop unrolls at trace
    time.
    """
    x_ref = refs[0]
    o_ref = refs[-1]
    param_refs = refs[1:-1]

    h = x_ref[...]                                  # (B, K) f32
    for i in range(num_layers):
        w = param_refs[2 * i][...]                  # (K_i, N_i) bf16
        b = param_refs[2 * i + 1][...]              # (1,  N_i) f32, row-broadcast
        h = jnp.dot(h.astype(jnp.bfloat16), w,
                    preferred_element_type=jnp.float32) + b
        if i < num_layers - 1:
            h = jnp.maximum(h, 0.0)                 # ReLU on hidden layers only
        # TODO(synk): nn.Dropout(0.2) is identity in eval mode; training-mode
        # stochastic masking (pltpu.prng_seed/prng_random_bits) not implemented.
    o_ref[...] = h.astype(o_ref.dtype)


def fused_mlp(x, flat_params):
    """x: (B, K) f32 with K a multiple of 128.
    flat_params: [w1, b1, ..., wL, bL]; weights bf16 (in, out), biases f32
    (1, out); only the last layer is lane-padded to a multiple of 128."""
    B, K = x.shape
    num_layers = len(flat_params) // 2
    n_out_pad = flat_params[-1].shape[1]

    # --- VMEM budget guard (v7x: 64 MiB physical / 32 MiB default scoped). ---
    resident = x.size * x.dtype.itemsize + B * n_out_pad * 4
    resident += sum(int(p.size) * p.dtype.itemsize for p in flat_params)
    if resident > 24 * 1024 * 1024:
        # TODO(synk): for large models, tile K per layer (accumulator scratch,
        # "arbitrary" K axis) or use pltpu.emit_pipeline instead of keeping
        # every weight resident; also set vmem_limit_bytes explicitly.
        raise NotImplementedError(
            f"resident working set {resident} B exceeds VMEM budget; "
            "K-tiled variant required for this size")

    in_specs = [pl.BlockSpec(x.shape, lambda: (0, 0))]
    for p in flat_params:
        in_specs.append(pl.BlockSpec(p.shape, lambda: (0, 0)))

    # Advisory cost estimate for XLA's scheduler around the custom call.
    flops = 0
    for i in range(num_layers):
        k_i, n_i = flat_params[2 * i].shape
        flops += 2 * B * k_i * n_i
    cost = pl.CostEstimate(flops=flops, transcendentals=0,
                           bytes_accessed=resident)

    kernel = functools.partial(_fused_mlp_kernel, num_layers=num_layers)
    return pl.pallas_call(
        kernel,
        out_shape=jax.ShapeDtypeStruct((B, n_out_pad), jnp.float32),
        in_specs=in_specs,
        out_specs=pl.BlockSpec((B, n_out_pad), lambda: (0, 0)),
        cost_estimate=cost,
        # NOTE: no grid — problem is tiny and fully VMEM-resident.  If batch
        # ever scales, add a grid over M (tile_m >= 256) with
        # dimension_semantics=("parallel",) so both v7x TensorCores split M
        # and the 256-wide MXUs on v6e/v7x are actually filled.
    )(x, *flat_params)


def init_mlp_params(key, input_dims, n_hiddens, n_class):
    """Deterministic init matching nn.Linear's U(-1/sqrt(fan_in), 1/sqrt(fan_in)).

    Returns a list of (w, b), f32, with w stored as (in, out) (torch weight
    transposed)."""
    if isinstance(n_hiddens, int):
        n_hiddens = [n_hiddens]
    dims = [input_dims] + list(n_hiddens) + [n_class]
    params = []
    for i in range(len(dims) - 1):
        fan_in, fan_out = dims[i], dims[i + 1]
        key, kw, kb = jax.random.split(key, 3)
        bound = 1.0 / jnp.sqrt(jnp.float32(fan_in))
        w = jax.random.uniform(kw, (fan_in, fan_out), jnp.float32, -bound, bound)
        b = jax.random.uniform(kb, (1, fan_out), jnp.float32, -bound, bound)
        params.append((w, b))
    return params


def pack_mlp_params(params):
    """Prepare kernel params: weights -> bf16 at their TRUE shapes; biases stay
    f32.  Only the final layer is zero-padded along N to a multiple of 128 so
    the output store is lane-dense.  Padded weight columns / bias lanes are
    exactly zero, so padded logits are zero and the wrapper slices them off."""
    flat = []
    last = len(params) - 1
    for i, (w, b) in enumerate(params):
        k, n = w.shape
        if i == last:
            n_pad = _round_up(n, 128)
            w = jnp.zeros((k, n_pad), jnp.float32).at[:, :n].set(w)
            b = jnp.zeros((1, n_pad), jnp.float32).at[:, :n].set(b)
        flat += [w.astype(jnp.bfloat16), b.astype(jnp.float32)]
    return flat


def mlp_forward(x_nchw, flat_params, *, input_dims, n_class):
    """Reproduces MLP.forward (eval mode): flatten, fused fc/relu stack, out fc."""
    B = x_nchw.shape[0]
    x = x_nchw.reshape(B, -1).astype(jnp.float32)   # == input.view(input.size(0), -1)
    assert x.shape[1] == input_dims
    out_pad = fused_mlp(x, flat_params)
    return out_pad[:, :n_class]


if __name__ == "__main__":
    key = jax.random.PRNGKey(0)

    # Small shapes consistent with the module: NCHW input flattened to input_dims.
    B, C, H, W = 2, 4, 16, 16
    input_dims = C * H * W          # 1024
    n_hiddens = [32, 32]
    n_class = 10

    k_in, k_params = jax.random.split(key)
    x = jax.random.normal(k_in, (B, C, H, W), dtype=jnp.float32)
    params = init_mlp_params(k_params, input_dims, n_hiddens, n_class)
    packed = pack_mlp_params(params)

    fwd = jax.jit(functools.partial(mlp_forward, input_dims=input_dims,
                                    n_class=n_class))
    out = jax.block_until_ready(fwd(x, packed))
    assert out.shape == (B, n_class), out.shape

    # Reference mirroring the kernel's numerics: bf16 dot operands, f32
    # accumulation, f32 bias/ReLU (eval-mode dropout == identity).
    ref = x.reshape(B, -1)
    for i, (w, b) in enumerate(params):
        ref = jnp.dot(ref.astype(jnp.bfloat16), w.astype(jnp.bfloat16),
                      preferred_element_type=jnp.float32) + b
        if i < len(params) - 1:
            ref = jnp.maximum(ref, 0.0)
    assert jnp.allclose(out, ref, atol=5e-3, rtol=5e-3), \
        float(jnp.max(jnp.abs(out - ref)))

    print("KERNEL_OK")
</pallas_src>

<mosaic_0001>
module attributes {stable_mosaic.version = 11 : i64} {
  func.func @_fused_mlp_kernel(%arg0: memref<2x1024xf32, #tpu.memory_space<vmem>>, %arg1: memref<1024x32xbf16, #tpu.memory_space<vmem>>, %arg2: memref<1x32xf32, #tpu.memory_space<vmem>>, %arg3: memref<32x32xbf16, #tpu.memory_space<vmem>>, %arg4: memref<1x32xf32, #tpu.memory_space<vmem>>, %arg5: memref<32x128xbf16, #tpu.memory_space<vmem>>, %arg6: memref<1x128xf32, #tpu.memory_space<vmem>>, %arg7: memref<2x128xf32, #tpu.memory_space<vmem>>) attributes {dimension_semantics = [], scalar_prefetch = 0 : i64, scratch_operands = 0 : i64, tpu.core_type = #tpu.core_type<tc>} {
    %c0 = arith.constant 0 : index
    %c0_0 = arith.constant 0 : index
    %0 = vector.load %arg0[%c0, %c0_0] : memref<2x1024xf32, #tpu.memory_space<vmem>>, vector<2x1024xf32>
    %c0_1 = arith.constant 0 : index
    %c0_2 = arith.constant 0 : index
    %1 = vector.load %arg1[%c0_1, %c0_2] : memref<1024x32xbf16, #tpu.memory_space<vmem>>, vector<1024x32xbf16>
    %c0_3 = arith.constant 0 : index
    %c0_4 = arith.constant 0 : index
    %2 = vector.load %arg2[%c0_3, %c0_4] : memref<1x32xf32, #tpu.memory_space<vmem>>, vector<1x32xf32>
    %3 = arith.truncf %0 : vector<2x1024xf32> to vector<2x1024xbf16>
    %cst = arith.constant dense<0.000000e+00> : vector<2x32xf32>
    %4 = tpu.matmul %3, %1, %cst {dimension_numbers = #tpu.dot_dimension_numbers<[1], [0], [0], [1], [0, 0, 1, 1], [], []>} : vector<2x1024xbf16>, vector<1024x32xbf16>, vector<2x32xf32> -> vector<2x32xf32>
    %5 = vector.broadcast %2 : vector<1x32xf32> to vector<2x32xf32>
    %6 = arith.addf %4, %5 : vector<2x32xf32>
    %cst_5 = arith.constant 0.000000e+00 : f32
    %7 = vector.broadcast %cst_5 : f32 to vector<2x32xf32>
    %8 = arith.maximumf %6, %7 : vector<2x32xf32>
    %c0_6 = arith.constant 0 : index
    %c0_7 = arith.constant 0 : index
    %9 = vector.load %arg3[%c0_6, %c0_7] : memref<32x32xbf16, #tpu.memory_space<vmem>>, vector<32x32xbf16>
    %c0_8 = arith.constant 0 : index
    %c0_9 = arith.constant 0 : index
    %10 = vector.load %arg4[%c0_8, %c0_9] : memref<1x32xf32, #tpu.memory_space<vmem>>, vector<1x32xf32>
    %11 = arith.truncf %8 : vector<2x32xf32> to vector<2x32xbf16>
    %cst_10 = arith.constant dense<0.000000e+00> : vector<2x32xf32>
    %12 = tpu.matmul %11, %9, %cst_10 {dimension_numbers = #tpu.dot_dimension_numbers<[1], [0], [0], [1], [0, 0, 1, 1], [], []>} : vector<2x32xbf16>, vector<32x32xbf16>, vector<2x32xf32> -> vector<2x32xf32>
    %13 = vector.broadcast %10 : vector<1x32xf32> to vector<2x32xf32>
    %14 = arith.addf %12, %13 : vector<2x32xf32>
    %cst_11 = arith.constant 0.000000e+00 : f32
    %15 = vector.broadcast %cst_11 : f32 to vector<2x32xf32>
    %16 = arith.maximumf %14, %15 : vector<2x32xf32>
    %c0_12 = arith.constant 0 : index
    %c0_13 = arith.constant 0 : index
    %17 = vector.load %arg5[%c0_12, %c0_13] : memref<32x128xbf16, #tpu.memory_space<vmem>>, vector<32x128xbf16>
    %c0_14 = arith.constant 0 : index
    %c0_15 = arith.constant 0 : index
    %18 = vector.load %arg6[%c0_14, %c0_15] : memref<1x128xf32, #tpu.memory_space<vmem>>, vector<1x128xf32>
    %19 = arith.truncf %16 : vector<2x32xf32> to vector<2x32xbf16>
    %cst_16 = arith.constant dense<0.000000e+00> : vector<2x128xf32>
    %20 = tpu.matmul %19, %17, %cst_16 {dimension_numbers = #tpu.dot_dimension_numbers<[1], [0], [0], [1], [0, 0, 1, 1], [], []>} : vector<2x32xbf16>, vector<32x128xbf16>, vector<2x128xf32> -> vector<2x128xf32>
    %21 = vector.broadcast %18 : vector<1x128xf32> to vector<2x128xf32>
    %22 = arith.addf %20, %21 : vector<2x128xf32>
    %c0_17 = arith.constant 0 : index
    %c0_18 = arith.constant 0 : index
    %23 = vector.load %arg7[%c0_17, %c0_18] : memref<2x128xf32, #tpu.memory_space<vmem>>, vector<2x128xf32>
    tpu.vector_store %arg7[%c0_17, %c0_18], %22 {strides = array<i32>} : memref<2x128xf32, #tpu.memory_space<vmem>>, vector<2x128xf32>,
    return
  }
}

</mosaic_0001>

<llo_original>
// kernel: mlp_forward.1
$region0: #{mlp_forward.1}
  #allocation0 [shape = 'u32[]', space=smem, size = 0x4, offset = 0x4, fixed_abs, tag = 'smem constant byte address 0x4 - core index']
  #allocation1 [shape = 'u32[144,128]{1,0:T(1,128)}', space=vmem, size = 0x12000, scoped, tag = 'internal scratch']
  %s0 = inlined_call_operand.vmem [shape: f32[2,1024], index: 0, kind: input, shape index: {}]
  %s1 = inlined_call_operand.vmem [shape: bf16[1024,32], index: 1, kind: input, shape index: {}]
  %s2 = inlined_call_operand.vmem [shape: f32[1,32], index: 2, kind: input, shape index: {}]
  %s3 = inlined_call_operand.vmem [shape: bf16[32,32], index: 3, kind: input, shape index: {}]
  %s4 = inlined_call_operand.vmem [shape: f32[1,32], index: 4, kind: input, shape index: {}]
  %s5 = inlined_call_operand.vmem [shape: bf16[32,128], index: 5, kind: input, shape index: {}]
  %s6 = inlined_call_operand.vmem [shape: f32[1,128], index: 6, kind: input, shape index: {}]
  %s7 = inlined_call_operand.hbm [shape: f32[2,128], index: 7, kind: output, shape index: {}]
  %s8 = sld [smem:[#allocation0]]
  $region38: #{mlp_forward.1} parent=0
    _
  %s10 = ssub.s32 1, %s8
  %s11 = scalar_select 0, %s10, %s8
  $region1: #{mlp_forward.1} parent=0
    #allocation2 [shape = 'u8[1024]{0}', space=vmem, size = 0x400, scoped, tag = 'output window, operand 0, single buffered']
    #allocation3 [shape = 's32[1]{0}', space=sflag, size = 0x4, scoped, tag = 'scoped memory for mlp_forward.1']
    %12 = vsyncpa [#allocation3], 0
    // Predicated region
    $region2: #{mlp_forward.1} parent=1 // pred_check
      _
    $region3: #{mlp_forward.1} parent=1 // pred_check_branch
      %14 = sbr.rel (0) target = $region5
    $region4: #{mlp_forward.1} parent=1 // pred_region
      _
    $region5: #{mlp_forward.1} parent=1 // pred_fallthru
      _
    // Predicated region
    $region6: #{mlp_forward.1} parent=1 // pred_check
      _
    $region7: #{mlp_forward.1} parent=1 // pred_check_branch
      %16 = sbr.rel (0) target = $region9
    $region8: #{mlp_forward.1} parent=1 // pred_region
      _
    $region9: #{mlp_forward.1} parent=1 // pred_fallthru
      _
    // Predicated region
    $region10: #{mlp_forward.1} parent=1 // pred_check
      _
    $region11: #{mlp_forward.1} parent=1 // pred_check_branch
      %18 = sbr.rel (0) target = $region13
    $region12: #{mlp_forward.1} parent=1 // pred_region
      _
    $region13: #{mlp_forward.1} parent=1 // pred_fallthru
      _
    // Predicated region
    $region14: #{mlp_forward.1} parent=1 // pred_check
      _
    $region15: #{mlp_forward.1} parent=1 // pred_check_branch
      %20 = sbr.rel (0) target = $region17
    $region16: #{mlp_forward.1} parent=1 // pred_region
      _
    $region17: #{mlp_forward.1} parent=1 // pred_fallthru
      _
    // Predicated region
    $region18: #{mlp_forward.1} parent=1 // pred_check
      _
    $region19: #{mlp_forward.1} parent=1 // pred_check_branch
      %22 = sbr.rel (0) target = $region21
    $region20: #{mlp_forward.1} parent=1 // pred_region
      _
    $region21: #{mlp_forward.1} parent=1 // pred_fallthru
      _
    // Predicated region
    $region22: #{mlp_forward.1} parent=1 // pred_check
      _
    $region23: #{mlp_forward.1} parent=1 // pred_check_branch
      %24 = sbr.rel (0) target = $region25
    $region24: #{mlp_forward.1} parent=1 // pred_region
      _
    $region25: #{mlp_forward.1} parent=1 // pred_fallthru
      _
    // Predicated region
    $region26: #{mlp_forward.1} parent=1 // pred_check
      _
    $region27: #{mlp_forward.1} parent=1 // pred_check_branch
      %26 = sbr.rel (0) target = $region29
    $region28: #{mlp_forward.1} parent=1 // pred_region
      _
    $region29: #{mlp_forward.1} parent=1 // pred_fallthru
      _
    %v28 = vld [vmem:[%s0] sm:$0xff]
    %v29 = vld [vmem:[%s0 + $0x8] sm:$0xff]
    %v30 = vld [vmem:[%s1] sm:$0xf]
    %v31 = vld [vmem:[%s1 + $0x4] sm:$0xf]
    %v32 = vld [vmem:[%s1 + $0x8] sm:$0xf]
    %v33 = vld [vmem:[%s1 + $0xc] sm:$0xf]
    %v34 = vld [vmem:[%s1 + $0x10] sm:$0xf]
    %v35 = vld [vmem:[%s1 + $0x14] sm:$0xf]
    %v36 = vld [vmem:[%s1 + $0x18] sm:$0xf]
    %v37 = vld [vmem:[%s1 + $0x1c] sm:$0xf]
    %v38 = vld [vmem:[%s1 + $0x20] sm:$0xf]
    %v39 = vld [vmem:[%s1 + $0x24] sm:$0xf]
    %v40 = vld [vmem:[%s1 + $0x28] sm:$0xf]
    %v41 = vld [vmem:[%s1 + $0x2c] sm:$0xf]
    %v42 = vld [vmem:[%s1 + $0x30] sm:$0xf]
    %v43 = vld [vmem:[%s1 + $0x34] sm:$0xf]
    %v44 = vld [vmem:[%s1 + $0x38] sm:$0xf]
    %v45 = vld [vmem:[%s1 + $0x3c] sm:$0xf]
    %v46 = vld [vmem:[%s1 + $0x40] sm:$0xf]
    %v47 = vld [vmem:[%s1 + $0x44] sm:$0xf]
    %v48 = vld [vmem:[%s1 + $0x48] sm:$0xf]
    %v49 = vld [vmem:[%s1 + $0x4c] sm:$0xf]
    %v50 = vld [vmem:[%s1 + $0x50] sm:$0xf]
    %v51 = vld [vmem:[%s1 + $0x54] sm:$0xf]
    %v52 = vld [vmem:[%s1 + $0x58] sm:$0xf]
    %v53 = vld [vmem:[%s1 + $0x5c] sm:$0xf]
    %v54 = vld [vmem:[%s1 + $0x60] sm:$0xf]
    %v55 = vld [vmem:[%s1 + $0x64] sm:$0xf]
    %v56 = vld [vmem:[%s1 + $0x68] sm:$0xf]
    %v57 = vld [vmem:[%s1 + $0x6c] sm:$0xf]
    %v58 = vld [vmem:[%s1 + $0x70] sm:$0xf]
    %v59 = vld [vmem:[%s1 + $0x74] sm:$0xf]
    %v60 = vld [vmem:[%s1 + $0x78] sm:$0xf]
    %v61 = vld [vmem:[%s1 + $0x7c] sm:$0xf]
    %v62 = vld [vmem:[%s1 + $0x80] sm:$0xf]
    %v63 = vld [vmem:[%s1 + $0x84] sm:$0xf]
    %v64 = vld [vmem:[%s1 + $0x88] sm:$0xf]
    %v65 = vld [vmem:[%s1 + $0x8c] sm:$0xf]
    %v66 = vld [vmem:[%s1 + $0x90] sm:$0xf]
    %v67 = vld [vmem:[%s1 + $0x94] sm:$0xf]
    %v68 = vld [vmem:[%s1 + $0x98] sm:$0xf]
    %v69 = vld [vmem:[%s1 + $0x9c] sm:$0xf]
    %v70 = vld [vmem:[%s1 + $0xa0] sm:$0xf]
    %v71 = vld [vmem:[%s1 + $0xa4] sm:$0xf]
    %v72 = vld [vmem:[%s1 + $0xa8] sm:$0xf]
    %v73 = vld [vmem:[%s1 + $0xac] sm:$0xf]
    %v74 = vld [vmem:[%s1 + $0xb0] sm:$0xf]
    %v75 = vld [vmem:[%s1 + $0xb4] sm:$0xf]
    %v76 = vld [vmem:[%s1 + $0xb8] sm:$0xf]
    %v77 = vld [vmem:[%s1 + $0xbc] sm:$0xf]
    %v78 = vld [vmem:[%s1 + $0xc0] sm:$0xf]
    %v79 = vld [vmem:[%s1 + $0xc4] sm:$0xf]
    %v80 = vld [vmem:[%s1 + $0xc8] sm:$0xf]
    %v81 = vld [vmem:[%s1 + $0xcc] sm:$0xf]
    %v82 = vld [vmem:[%s1 + $0xd0] sm:$0xf]
    %v83 = vld [vmem:[%s1 + $0xd4] sm:$0xf]
    %v84 = vld [vmem:[%s1 + $0xd8] sm:$0xf]
    %v85 = vld [vmem:[%s1 + $0xdc] sm:$0xf]
    %v86 = vld [vmem:[%s1 + $0xe0] sm:$0xf]
    %v87 = vld [vmem:[%s1 + $0xe4] sm:$0xf]
    %v88 = vld [vmem:[%s1 + $0xe8] sm:$0xf]
    %v89 = vld [vmem:[%s1 + $0xec] sm:$0xf]
    %v90 = vld [vmem:[%s1 + $0xf0] sm:$0xf]
    %v91 = vld [vmem:[%s1 + $0xf4] sm:$0xf]
    %v92 = vld [vmem:[%s1 + $0xf8] sm:$0xf]
    %v93 = vld [vmem:[%s1 + $0xfc] sm:$0xf]
    %v94 = vld [vmem:[%s1 + $0x100] sm:$0xf]
    %v95 = vld [vmem:[%s1 + $0x104] sm:$0xf]
    %v96 = vld [vmem:[%s1 + $0x108] sm:$0xf]
    %v97 = vld [vmem:[%s1 + $0x10c] sm:$0xf]
    %v98 = vld [vmem:[%s1 + $0x110] sm:$0xf]
    %v99 = vld [vmem:[%s1 + $0x114] sm:$0xf]
    %v100 = vld [vmem:[%s1 + $0x118] sm:$0xf]
    %v101 = vld [vmem:[%s1 + $0x11c] sm:$0xf]
    %v102 = vld [vmem:[%s1 + $0x120] sm:$0xf]
    %v103 = vld [vmem:[%s1 + $0x124] sm:$0xf]
    %v104 = vld [vmem:[%s1 + $0x128] sm:$0xf]
    %v105 = vld [vmem:[%s1 + $0x12c] sm:$0xf]
    %v106 = vld [vmem:[%s1 + $0x130] sm:$0xf]
    %v107 = vld [vmem:[%s1 + $0x134] sm:$0xf]
    %v108 = vld [vmem:[%s1 + $0x138] sm:$0xf]
    %v109 = vld [vmem:[%s1 + $0x13c] sm:$0xf]
    %v110 = vld [vmem:[%s1 + $0x140] sm:$0xf]
    %v111 = vld [vmem:[%s1 + $0x144] sm:$0xf]
    %v112 = vld [vmem:[%s1 + $0x148] sm:$0xf]
    %v113 = vld [vmem:[%s1 + $0x14c] sm:$0xf]
    %v114 = vld [vmem:[%s1 + $0x150] sm:$0xf]
    %v115 = vld [vmem:[%s1 + $0x154] sm:$0xf]
    %v116 = vld [vmem:[%s1 + $0x158] sm:$0xf]
    %v117 = vld [vmem:[%s1 + $0x15c] sm:$0xf]
    %v118 = vld [vmem:[%s1 + $0x160] sm:$0xf]
    %v119 = vld [vmem:[%s1 + $0x164] sm:$0xf]
    %v120 = vld [vmem:[%s1 + $0x168] sm:$0xf]
    %v121 = vld [vmem:[%s1 + $0x16c] sm:$0xf]
    %v122 = vld [vmem:[%s1 + $0x170] sm:$0xf]
    %v123 = vld [vmem:[%s1 + $0x174] sm:$0xf]
    %v124 = vld [vmem:[%s1 + $0x178] sm:$0xf]
    %v125 = vld [vmem:[%s1 + $0x17c] sm:$0xf]
    %v126 = vld [vmem:[%s1 + $0x180] sm:$0xf]
    %v127 = vld [vmem:[%s1 + $0x184] sm:$0xf]
    %v128 = vld [vmem:[%s1 + $0x188] sm:$0xf]
    %v129 = vld [vmem:[%s1 + $0x18c] sm:$0xf]
    %v130 = vld [vmem:[%s1 + $0x190] sm:$0xf]
    %v131 = vld [vmem:[%s1 + $0x194] sm:$0xf]
    %v132 = vld [vmem:[%s1 + $0x198] sm:$0xf]
    %v133 = vld [vmem:[%s1 + $0x19c] sm:$0xf]
    %v134 = vld [vmem:[%s1 + $0x1a0] sm:$0xf]
    %v135 = vld [vmem:[%s1 + $0x1a4] sm:$0xf]
    %v136 = vld [vmem:[%s1 + $0x1a8] sm:$0xf]
    %v137 = vld [vmem:[%s1 + $0x1ac] sm:$0xf]
    %v138 = vld [vmem:[%s1 + $0x1b0] sm:$0xf]
    %v139 = vld [vmem:[%s1 + $0x1b4] sm:$0xf]
    %v140 = vld [vmem:[%s1 + $0x1b8] sm:$0xf]
    %v141 = vld [vmem:[%s1 + $0x1bc] sm:$0xf]
    %v142 = vld [vmem:[%s1 + $0x1c0] sm:$0xf]
    %v143 = vld [vmem:[%s1 + $0x1c4] sm:$0xf]
    %v144 = vld [vmem:[%s1 + $0x1c8] sm:$0xf]
    %v145 = vld [vmem:[%s1 + $0x1cc] sm:$0xf]
    %v146 = vld [vmem:[%s1 + $0x1d0] sm:$0xf]
    %v147 = vld [vmem:[%s1 + $0x1d4] sm:$0xf]
    %v148 = vld [vmem:[%s1 + $0x1d8] sm:$0xf]
    %v149 = vld [vmem:[%s1 + $0x1dc] sm:$0xf]
    %v150 = vld [vmem:[%s1 + $0x1e0] sm:$0xf]
    %v151 = vld [vmem:[%s1 + $0x1e4] sm:$0xf]
    %v152 = vld [vmem:[%s1 + $0x1e8] sm:$0xf]
    %v153 = vld [vmem:[%s1 + $0x1ec] sm:$0xf]
    %v154 = vld [vmem:[%s1 + $0x1f0] sm:$0xf]
    %v155 = vld [vmem:[%s1 + $0x1f4] sm:$0xf]
    %v156 = vld [vmem:[%s1 + $0x1f8] sm:$0xf]
    %v157 = vld [vmem:[%s1 + $0x1fc] sm:$0xf]
    %v158 = vld [vmem:[%s2] sm:$0x1]
    %v161 = vcombine.high %v28, %v28
    %v163 = vunpack.c.l.s4 1983009808
    %v164 = vunpack.c.0.s8 %v163
    %v165 = vlaneseq
    %v166 = vshrl.u32 %v165, 7
    %v167 = vsub.s32 %v164, %v166
    %v168 = vrot.slane %v28, %v167
    %v170 = vunpack.c.l.s4 1983009808
    %v171 = vunpack.c.0.s8 %v170
    %v172 = vlaneseq
    %v173 = vshrl.u32 %v172, 7
    %v174 = vsub.s32 %v171, %v173
    %v175 = vrot.slane %v161, %v174
    %v176 = vcombine.high %v168, %v168
    %v177 = vcombine.high %v175, %v175
    %v178 = vcombine.high %v29, %v29
    %v180 = vunpack.c.l.s4 1983009808
    %v181 = vunpack.c.0.s8 %v180
    %v182 = vlaneseq
    %v183 = vshrl.u32 %v182, 7
    %v184 = vsub.s32 %v181, %v183
    %v185 = vrot.slane %v29, %v184
    %v187 = vunpack.c.l.s4 1983009808
    %v188 = vunpack.c.0.s8 %v187
    %v189 = vlaneseq
    %v190 = vshrl.u32 %v189, 7
    %v191 = vsub.s32 %v188, %v190
    %v192 = vrot.slane %v178, %v191
    %v193 = vcombine.high %v185, %v185
    %v194 = vcombine.high %v192, %v192
    %v203 = vpack.c.bf16 %v168, %v168
    %v204 = vpack.c.bf16 %v176, %v176
    %v205 = vpack.c.bf16 %v175, %v175
    %v206 = vpack.c.bf16 %v177, %v177
    %v207 = vpack.c.bf16 %v185, %v185
    %v208 = vpack.c.bf16 %v193, %v193
    %v209 = vpack.c.bf16 %v192, %v192
    %v210 = vpack.c.bf16 %v194, %v194
    %v212 = vlaneseq
    %v213 = vshrl.u32 %v212, 7
    %v214 = vsub.s32 0, %v213
    %v215 = vrot.slane %v158, %v214
    %v345 = vunpack.c.l.b16 %v30
    %v346 = vunpack.c.l.b16 %v31
    %v347 = vunpack.c.l.b16 %v32
    %v348 = vunpack.c.l.b16 %v33
    %v349 = vunpack.c.l.b16 %v34
    %v350 = vunpack.c.l.b16 %v35
    %v351 = vunpack.c.l.b16 %v36
    %v352 = vunpack.c.l.b16 %v37
    %v353 = vunpack.c.l.b16 %v38
    %v354 = vunpack.c.l.b16 %v39
    %v355 = vunpack.c.l.b16 %v40
    %v356 = vunpack.c.l.b16 %v41
    %v357 = vunpack.c.l.b16 %v42
    %v358 = vunpack.c.l.b16 %v43
    %v359 = vunpack.c.l.b16 %v44
    %v360 = vunpack.c.l.b16 %v45
    %v361 = vunpack.c.l.b16 %v46
    %v362 = vunpack.c.l.b16 %v47
    %v363 = vunpack.c.l.b16 %v48
    %v364 = vunpack.c.l.b16 %v49
    %v365 = vunpack.c.l.b16 %v50
    %v366 = vunpack.c.l.b16 %v51
    %v367 = vunpack.c.l.b16 %v52
    %v368 = vunpack.c.l.b16 %v53
    %v369 = vunpack.c.l.b16 %v54
    %v370 = vunpack.c.l.b16 %v55
    %v371 = vunpack.c.l.b16 %v56
    %v372 = vunpack.c.l.b16 %v57
    %v373 = vunpack.c.l.b16 %v58
    %v374 = vunpack.c.l.b16 %v59
    %v375 = vunpack.c.l.b16 %v60
    %v376 = vunpack.c.l.b16 %v61
    %v377 = vunpack.c.l.b16 %v62
    %v378 = vunpack.c.l.b16 %v63
    %v379 = vunpack.c.l.b16 %v64
    %v380 = vunpack.c.l.b16 %v65
    %v381 = vunpack.c.l.b16 %v66
    %v382 = vunpack.c.l.b16 %v67
    %v383 = vunpack.c.l.b16 %v68
    %v384 = vunpack.c.l.b16 %v69
    %v385 = vunpack.c.l.b16 %v70
    %v386 = vunpack.c.l.b16 %v71
    %v387 = vunpack.c.l.b16 %v72
    %v388 = vunpack.c.l.b16 %v73
    %v389 = vunpack.c.l.b16 %v74
    %v390 = vunpack.c.l.b16 %v75
    %v391 = vunpack.c.l.b16 %v76
    %v392 = vunpack.c.l.b16 %v77
    %v393 = vunpack.c.l.b16 %v78
    %v394 = vunpack.c.l.b16 %v79
    %v395 = vunpack.c.l.b16 %v80
    %v396 = vunpack.c.l.b16 %v81
    %v397 = vunpack.c.l.b16 %v82
    %v398 = vunpack.c.l.b16 %v83
    %v399 = vunpack.c.l.b16 %v84
    %v400 = vunpack.c.l.b16 %v85
    %v401 = vunpack.c.l.b16 %v86
    %v402 = vunpack.c.l.b16 %v87
    %v403 = vunpack.c.l.b16 %v88
    %v404 = vunpack.c.l.b16 %v89
    %v405 = vunpack.c.l.b16 %v90
    %v406 = vunpack.c.l.b16 %v91
    %v407 = vunpack.c.l.b16 %v92
    %v408 = vunpack.c.l.b16 %v93
    %v409 = vunpack.c.l.b16 %v94
    %v410 = vunpack.c.l.b16 %v95
    %v411 = vunpack.c.l.b16 %v96
    %v412 = vunpack.c.l.b16 %v97
    %v413 = vunpack.c.l.b16 %v98
    %v414 = vunpack.c.l.b16 %v99
    %v415 = vunpack.c.l.b16 %v100
    %v416 = vunpack.c.l.b16 %v101
    %v417 = vunpack.c.l.b16 %v102
    %v418 = vunpack.c.l.b16 %v103
    %v419 = vunpack.c.l.b16 %v104
    %v420 = vunpack.c.l.b16 %v105
    %v421 = vunpack.c.l.b16 %v106
    %v422 = vunpack.c.l.b16 %v107
    %v423 = vunpack.c.l.b16 %v108
    %v424 = vunpack.c.l.b16 %v109
    %v425 = vunpack.c.l.b16 %v110
    %v426 = vunpack.c.l.b16 %v111
    %v427 = vunpack.c.l.b16 %v112
    %v428 = vunpack.c.l.b16 %v113
    %v429 = vunpack.c.l.b16 %v114
    %v430 = vunpack.c.l.b16 %v115
    %v431 = vunpack.c.l.b16 %v116
    %v432 = vunpack.c.l.b16 %v117
    %v433 = vunpack.c.l.b16 %v118
    %v434 = vunpack.c.l.b16 %v119
    %v435 = vunpack.c.l.b16 %v120
    %v436 = vunpack.c.l.b16 %v121
    %v437 = vunpack.c.l.b16 %v122
    %v438 = vunpack.c.l.b16 %v123
    %v439 = vunpack.c.l.b16 %v124
    %v440 = vunpack.c.l.b16 %v125
    %v441 = vunpack.c.l.b16 %v126
    %v442 = vunpack.c.l.b16 %v127
    %v443 = vunpack.c.l.b16 %v128
    %v444 = vunpack.c.l.b16 %v129
    %v445 = vunpack.c.l.b16 %v130
    %v446 = vunpack.c.l.b16 %v131
    %v447 = vunpack.c.l.b16 %v132
    %v448 = vunpack.c.l.b16 %v133
    %v449 = vunpack.c.l.b16 %v134
    %v450 = vunpack.c.l.b16 %v135
    %v451 = vunpack.c.l.b16 %v136
    %v452 = vunpack.c.l.b16 %v137
    %v453 = vunpack.c.l.b16 %v138
    %v454 = vunpack.c.l.b16 %v139
    %v455 = vunpack.c.l.b16 %v140
    %v456 = vunpack.c.l.b16 %v141
    %v457 = vunpack.c.l.b16 %v142
    %v458 = vunpack.c.l.b16 %v143
    %v459 = vunpack.c.l.b16 %v144
    %v460 = vunpack.c.l.b16 %v145
    %v461 = vunpack.c.l.b16 %v146
    %v462 = vunpack.c.l.b16 %v147
    %v463 = vunpack.c.l.b16 %v148
    %v464 = vunpack.c.l.b16 %v149
    %v465 = vunpack.c.l.b16 %v150
    %v466 = vunpack.c.l.b16 %v151
    %v467 = vunpack.c.l.b16 %v152
    %v468 = vunpack.c.l.b16 %v153
    %v469 = vunpack.c.l.b16 %v154
    %v470 = vunpack.c.l.b16 %v155
    %v471 = vunpack.c.l.b16 %v156
    %v472 = vunpack.c.l.b16 %v157
    %v473 = vpack.c.b16 %v346, %v345
    %v474 = vpack.c.b16 %v348, %v347
    %v475 = vpack.c.b16 %v350, %v349
    %v476 = vpack.c.b16 %v352, %v351
    %v477 = vpack.c.b16 %v354, %v353
    %v478 = vpack.c.b16 %v356, %v355
    %v479 = vpack.c.b16 %v358, %v357
    %v480 = vpack.c.b16 %v360, %v359
    %v481 = vpack.c.b16 %v362, %v361
    %v482 = vpack.c.b16 %v364, %v363
    %v483 = vpack.c.b16 %v366, %v365
    %v484 = vpack.c.b16 %v368, %v367
    %v485 = vpack.c.b16 %v370, %v369
    %v486 = vpack.c.b16 %v372, %v371
    %v487 = vpack.c.b16 %v374, %v373
    %v488 = vpack.c.b16 %v376, %v375
    %v489 = vpack.c.b16 %v378, %v377
    %v490 = vpack.c.b16 %v380, %v379
    %v491 = vpack.c.b16 %v382, %v381
    %v492 = vpack.c.b16 %v384, %v383
    %v493 = vpack.c.b16 %v386, %v385
    %v494 = vpack.c.b16 %v388, %v387
    %v495 = vpack.c.b16 %v390, %v389
    %v496 = vpack.c.b16 %v392, %v391
    %v497 = vpack.c.b16 %v394, %v393
    %v498 = vpack.c.b16 %v396, %v395
    %v499 = vpack.c.b16 %v398, %v397
    %v500 = vpack.c.b16 %v400, %v399
    %v501 = vpack.c.b16 %v402, %v401
    %v502 = vpack.c.b16 %v404, %v403
    %v503 = vpack.c.b16 %v406, %v405
    %v504 = vpack.c.b16 %v408, %v407
    %v505 = vpack.c.b16 %v410, %v409
    %v506 = vpack.c.b16 %v412, %v411
    %v507 = vpack.c.b16 %v414, %v413
    %v508 = vpack.c.b16 %v416, %v415
    %v509 = vpack.c.b16 %v418, %v417
    %v510 = vpack.c.b16 %v420, %v419
    %v511 = vpack.c.b16 %v422, %v421
    %v512 = vpack.c.b16 %v424, %v423
    %v513 = vpack.c.b16 %v426, %v425
    %v514 = vpack.c.b16 %v428, %v427
    %v515 = vpack.c.b16 %v430, %v429
    %v516 = vpack.c.b16 %v432, %v431
    %v517 = vpack.c.b16 %v434, %v433
    %v518 = vpack.c.b16 %v436, %v435
    %v519 = vpack.c.b16 %v438, %v437
    %v520 = vpack.c.b16 %v440, %v439
    %v521 = vpack.c.b16 %v442, %v441
    %v522 = vpack.c.b16 %v444, %v443
    %v523 = vpack.c.b16 %v446, %v445
    %v524 = vpack.c.b16 %v448, %v447
    %v525 = vpack.c.b16 %v450, %v449
    %v526 = vpack.c.b16 %v452, %v451
    %v527 = vpack.c.b16 %v454, %v453
    %v528 = vpack.c.b16 %v456, %v455
    %v529 = vpack.c.b16 %v458, %v457
    %v530 = vpack.c.b16 %v460, %v459
    %v531 = vpack.c.b16 %v462, %v461
    %v532 = vpack.c.b16 %v464, %v463
    %v533 = vpack.c.b16 %v466, %v465
    %v534 = vpack.c.b16 %v468, %v467
    %v535 = vpack.c.b16 %v470, %v469
    %v536 = vpack.c.b16 %v472, %v471
    %601 = vmatprep.subr.bf16.mxu0 0
    %602 = vmatpush1.bf16.msra.mxu0 %v480
    %603 = vmatprep.subr.bf16.mxu0 0
    %604 = vmatpush1.bf16.msra.mxu0 %v479
    %605 = vmatprep.subr.bf16.mxu0 0
    %606 = vmatpush1.bf16.msra.mxu0 %v478
    %607 = vmatprep.subr.bf16.mxu0 0
    %608 = vmatpush1.bf16.msra.mxu0 %v477
    %609 = vmatprep.subr.bf16.mxu0 0
    %610 = vmatpush1.bf16.msra.mxu0 %v476
    %611 = vmatprep.subr.bf16.mxu0 0
    %612 = vmatpush1.bf16.msra.mxu0 %v475
    %613 = vmatprep.subr.bf16.mxu0 0
    %614 = vmatpush1.bf16.msra.mxu0 %v474
    %615 = vmatprep.subr.bf16.mxu0 0
    %616 = vmatpush1.bf16.msra.mxu0 %v473
    %617 = vmatprep.subr.bf16.mxu0 0
    %618 = vmatpush2.bf16.msra.mxu0 %v488
    %619 = vmatprep.subr.bf16.mxu0 0
    %620 = vmatpush2.bf16.msra.mxu0 %v487
    %621 = vmatprep.subr.bf16.mxu0 0
    %622 = vmatpush2.bf16.msra.mxu0 %v486
    %623 = vmatprep.subr.bf16.mxu0 0
    %624 = vmatpush2.bf16.msra.mxu0 %v485
    %625 = vmatprep.subr.bf16.mxu0 0
    %626 = vmatpush2.bf16.msra.mxu0 %v484
    %627 = vmatprep.subr.bf16.mxu0 0
    %628 = vmatpush2.bf16.msra.mxu0 %v483
    %629 = vmatprep.subr.bf16.mxu0 0
    %630 = vmatpush2.bf16.msra.mxu0 %v482
    %631 = vmatprep.subr.bf16.mxu0 0
    %632 = vmatpush2.bf16.msra.mxu0 %v481
    %633 = vmatprep.mubr.bf16.mxu0 %v204
    %634 = vmatmul.mubr.bf16.gmra.mxu0 %v203
    %v635 = vpop.f32.mrf.mxu0
    %v636 = vadd.f32 %v215, %v635
    %v637 = vpop.f32.mrf.mxu0
    %v638 = vpop.f32.mrf.mxu0
    %v639 = vpop.f32.mrf.mxu0
    %640 = vdwg.mxu0
    %641 = vmatprep.subr.bf16.mxu0 0
    %642 = vmatpush1.bf16.msra.mxu0 %v496
    %643 = vmatprep.subr.bf16.mxu0 0
    %644 = vmatpush1.bf16.msra.mxu0 %v495
    %645 = vmatprep.subr.bf16.mxu0 0
    %646 = vmatpush1.bf16.msra.mxu0 %v494
    %647 = vmatprep.subr.bf16.mxu0 0
    %648 = vmatpush1.bf16.msra.mxu0 %v493
    %649 = vmatprep.subr.bf16.mxu0 0
    %650 = vmatpush1.bf16.msra.mxu0 %v492
    %651 = vmatprep.subr.bf16.mxu0 0
    %652 = vmatpush1.bf16.msra.mxu0 %v491
    %653 = vmatprep.subr.bf16.mxu0 0
    %654 = vmatpush1.bf16.msra.mxu0 %v490
    %655 = vmatprep.subr.bf16.mxu0 0
    %656 = vmatpush1.bf16.msra.mxu0 %v489
    %657 = vmatprep.subr.bf16.mxu0 0
    %658 = vmatpush2.bf16.msra.mxu0 %v504
    %659 = vmatprep.subr.bf16.mxu0 0
    %660 = vmatpush2.bf16.msra.mxu0 %v503
    %661 = vmatprep.subr.bf16.mxu0 0
    %662 = vmatpush2.bf16.msra.mxu0 %v502
    %663 = vmatprep.subr.bf16.mxu0 0
    %664 = vmatpush2.bf16.msra.mxu0 %v501
    %665 = vmatprep.subr.bf16.mxu0 0
    %666 = vmatpush2.bf16.msra.mxu0 %v500
    %667 = vmatprep.subr.bf16.mxu0 0
    %668 = vmatpush2.bf16.msra.mxu0 %v499
    %669 = vmatprep.subr.bf16.mxu0 0
    %670 = vmatpush2.bf16.msra.mxu0 %v498
    %671 = vmatprep.subr.bf16.mxu0 0
    %672 = vmatpush2.bf16.msra.mxu0 %v497
    %673 = vmatprep.mubr.bf16.mxu0 %v206
    %674 = vmatmul.mubr.bf16.gmra.mxu0 %v205
    %v675 = vpop.f32.mrf.mxu0
    %v676 = vadd.f32 %v636, %v675
    %v677 = vpop.f32.mrf.mxu0
    %v678 = vpop.f32.mrf.mxu0
    %v679 = vpop.f32.mrf.mxu0
    %680 = vdwg.mxu0
    %681 = vmatprep.subr.bf16.mxu0 0
    %682 = vmatpush1.bf16.msra.mxu0 %v512
    %683 = vmatprep.subr.bf16.mxu0 0
    %684 = vmatpush1.bf16.msra.mxu0 %v511
    %685 = vmatprep.subr.bf16.mxu0 0
    %686 = vmatpush1.bf16.msra.mxu0 %v510
    %687 = vmatprep.subr.bf16.mxu0 0
    %688 = vmatpush1.bf16.msra.mxu0 %v509
    %689 = vmatprep.subr.bf16.mxu0 0
    %690 = vmatpush1.bf16.msra.mxu0 %v508
    %691 = vmatprep.subr.bf16.mxu0 0
    %692 = vmatpush1.bf16.msra.mxu0 %v507
    %693 = vmatprep.subr.bf16.mxu0 0
    %694 = vmatpush1.bf16.msra.mxu0 %v506
    %695 = vmatprep.subr.bf16.mxu0 0
    %696 = vmatpush1.bf16.msra.mxu0 %v505
    %697 = vmatprep.subr.bf16.mxu0 0
    %698 = vmatpush2.bf16.msra.mxu0 %v520
    %699 = vmatprep.subr.bf16.mxu0 0
    %700 = vmatpush2.bf16.msra.mxu0 %v519
    %701 = vmatprep.subr.bf16.mxu0 0
    %702 = vmatpush2.bf16.msra.mxu0 %v518
    %703 = vmatprep.subr.bf16.mxu0 0
    %704 = vmatpush2.bf16.msra.mxu0 %v517
    %705 = vmatprep.subr.bf16.mxu0 0
    %706 = vmatpush2.bf16.msra.mxu0 %v516
    %707 = vmatprep.subr.bf16.mxu0 0
    %708 = vmatpush2.bf16.msra.mxu0 %v515
    %709 = vmatprep.subr.bf16.mxu0 0
    %710 = vmatpush2.bf16.msra.mxu0 %v514
    %711 = vmatprep.subr.bf16.mxu0 0
    %712 = vmatpush2.bf16.msra.mxu0 %v513
    %713 = vmatprep.mubr.bf16.mxu0 %v208
    %714 = vmatmul.mubr.bf16.gmra.mxu0 %v207
    %v715 = vpop.f32.mrf.mxu0
    %v716 = vadd.f32 %v676, %v715
    %v717 = vpop.f32.mrf.mxu0
    %v718 = vpop.f32.mrf.mxu0
    %v719 = vpop.f32.mrf.mxu0
    %720 = vdwg.mxu0
    %721 = vmatprep.subr.bf16.mxu0 0
    %722 = vmatpush1.bf16.msra.mxu0 %v528
    %723 = vmatprep.subr.bf16.mxu0 0
    %724 = vmatpush1.bf16.msra.mxu0 %v527
    %725 = vmatprep.subr.bf16.mxu0 0
    %726 = vmatpush1.bf16.msra.mxu0 %v526
    %727 = vmatprep.subr.bf16.mxu0 0
    %728 = vmatpush1.bf16.msra.mxu0 %v525
    %729 = vmatprep.subr.bf16.mxu0 0
    %730 = vmatpush1.bf16.msra.mxu0 %v524
    %731 = vmatprep.subr.bf16.mxu0 0
    %732 = vmatpush1.bf16.msra.mxu0 %v523
    %733 = vmatprep.subr.bf16.mxu0 0
    %734 = vmatpush1.bf16.msra.mxu0 %v522
    %735 = vmatprep.subr.bf16.mxu0 0
    %736 = vmatpush1.bf16.msra.mxu0 %v521
    %737 = vmatprep.subr.bf16.mxu0 0
    %738 = vmatpush2.bf16.msra.mxu0 %v536
    %739 = vmatprep.subr.bf16.mxu0 0
    %740 = vmatpush2.bf16.msra.mxu0 %v535
    %741 = vmatprep.subr.bf16.mxu0 0
    %742 = vmatpush2.bf16.msra.mxu0 %v534
    %743 = vmatprep.subr.bf16.mxu0 0
    %744 = vmatpush2.bf16.msra.mxu0 %v533
    %745 = vmatprep.subr.bf16.mxu0 0
    %746 = vmatpush2.bf16.msra.mxu0 %v532
    %747 = vmatprep.subr.bf16.mxu0 0
    %748 = vmatpush2.bf16.msra.mxu0 %v531
    %749 = vmatprep.subr.bf16.mxu0 0
    %750 = vmatpush2.bf16.msra.mxu0 %v530
    %751 = vmatprep.subr.bf16.mxu0 0
    %752 = vmatpush2.bf16.msra.mxu0 %v529
    %753 = vmatprep.mubr.bf16.mxu0 %v210
    %754 = vmatmul.mubr.bf16.gmra.mxu0 %v209
    %v755 = vpop.f32.mrf.mxu0
    %v756 = vadd.f32 %v716, %v755
    %v757 = vpop.f32.mrf.mxu0
    %v758 = vpop.f32.mrf.mxu0
    %v759 = vpop.f32.mrf.mxu0
    %760 = vdwg.mxu0
    %v761 = vmax.f32 %v756, 0.0
    %v762 = vld [vmem:[%s3] sm:$0xf]
    %v763 = vld [vmem:[%s3 + $0x4] sm:$0xf]
    %v764 = vld [vmem:[%s3 + $0x8] sm:$0xf]
    %v765 = vld [vmem:[%s3 + $0xc] sm:$0xf]
    %v766 = vld [vmem:[%s4] sm:$0x1]
    %v767 = vpack.c.bf16 %v761, %v761
    %v769 = vlaneseq
    %v770 = vshrl.u32 %v769, 7
    %v771 = vsub.s32 0, %v770
    %v772 = vrot.slane %v766, %v771
    %v778 = vunpack.c.l.b16 %v762
    %v779 = vunpack.c.l.b16 %v763
    %v780 = vunpack.c.l.b16 %v764
    %v781 = vunpack.c.l.b16 %v765
    %v782 = vpack.c.b16 %v779, %v778
    %v783 = vpack.c.b16 %v781, %v780
    %vm786 = vcmask 261120
    %v788 = vsel %vm786, %v767, 0
    %790 = vmatprep.subr.bf16.mxu0 0
    %791 = vmatpush1.bf16.msra.mxu0 0
    %792 = vmatprep.subr.bf16.mxu0 0
    %793 = vmatpush1.bf16.msra.mxu0 0
    %794 = vmatprep.subr.bf16.mxu0 0
    %795 = vmatpush1.bf16.msra.mxu0 0
    %796 = vmatprep.subr.bf16.mxu0 0
    %797 = vmatpush1.bf16.msra.mxu0 0
    %798 = vmatprep.subr.bf16.mxu0 0
    %799 = vmatpush1.bf16.msra.mxu0 0
    %800 = vmatprep.subr.bf16.mxu0 0
    %801 = vmatpush1.bf16.msra.mxu0 0
    %802 = vmatprep.subr.bf16.mxu0 0
    %803 = vmatpush1.bf16.msra.mxu0 %v783
    %804 = vmatprep.subr.bf16.mxu0 0
    %805 = vmatpush1.bf16.msra.mxu0 %v782
    %806 = vmatprep.subr.bf16.mxu0 0
    %807 = vmatpush2.bf16.msra.mxu0 0
    %808 = vmatprep.subr.bf16.mxu0 0
    %809 = vmatpush2.bf16.msra.mxu0 0
    %810 = vmatprep.subr.bf16.mxu0 0
    %811 = vmatpush2.bf16.msra.mxu0 0
    %812 = vmatprep.subr.bf16.mxu0 0
    %813 = vmatpush2.bf16.msra.mxu0 0
    %814 = vmatprep.subr.bf16.mxu0 0
    %815 = vmatpush2.bf16.msra.mxu0 0
    %816 = vmatprep.subr.bf16.mxu0 0
    %817 = vmatpush2.bf16.msra.mxu0 0
    %818 = vmatprep.subr.bf16.mxu0 0
    %819 = vmatpush2.bf16.msra.mxu0 0
    %820 = vmatprep.subr.bf16.mxu0 0
    %821 = vmatpush2.bf16.msra.mxu0 0
    %822 = vmatprep.mubr.bf16.mxu0 0
    %823 = vmatmul.mubr.bf16.gmra.mxu0 %v788
    %v824 = vpop.f32.mrf.mxu0
    %v825 = vadd.f32 %v772, %v824
    %v826 = vpop.f32.mrf.mxu0
    %v827 = vpop.f32.mrf.mxu0
    %v828 = vpop.f32.mrf.mxu0
    %829 = vdwg.mxu0
    %v830 = vmax.f32 %v825, 0.0
    %v831 = vld [vmem:[%s5] sm:$0xf]
    %v832 = vld [vmem:[%s5 + $0x4] sm:$0xf]
    %v833 = vld [vmem:[%s5 + $0x8] sm:$0xf]
    %v834 = vld [vmem:[%s5 + $0xc] sm:$0xf]
    %v835 = vld [vmem:[%s6] sm:$0x1]
    %v836 = vpack.c.bf16 %v830, %v830
    %v838 = vlaneseq
    %v839 = vshrl.u32 %v838, 7
    %v840 = vsub.s32 0, %v839
    %v841 = vrot.slane %v835, %v840
    %v847 = vunpack.c.l.b16 %v831
    %v848 = vunpack.c.l.b16 %v832
    %v849 = vunpack.c.l.b16 %v833
    %v850 = vunpack.c.l.b16 %v834
    %v851 = vpack.c.b16 %v848, %v847
    %v852 = vpack.c.b16 %v850, %v849
    %v856 = vsel %vm786, %v836, 0
    %858 = vmatprep.subr.bf16.mxu0 0
    %859 = vmatpush1.bf16.msra.mxu0 0
    %860 = vmatprep.subr.bf16.mxu0 0
    %861 = vmatpush1.bf16.msra.mxu0 0
    %862 = vmatprep.subr.bf16.mxu0 0
    %863 = vmatpush1.bf16.msra.mxu0 0
    %864 = vmatprep.subr.bf16.mxu0 0
    %865 = vmatpush1.bf16.msra.mxu0 0
    %866 = vmatprep.subr.bf16.mxu0 0
    %867 = vmatpush1.bf16.msra.mxu0 0
    %868 = vmatprep.subr.bf16.mxu0 0
    %869 = vmatpush1.bf16.msra.mxu0 0
    %870 = vmatprep.subr.bf16.mxu0 0
    %871 = vmatpush1.bf16.msra.mxu0 %v852
    %872 = vmatprep.subr.bf16.mxu0 0
    %873 = vmatpush1.bf16.msra.mxu0 %v851
    %874 = vmatprep.subr.bf16.mxu0 0
    %875 = vmatpush2.bf16.msra.mxu0 0
    %876 = vmatprep.subr.bf16.mxu0 0
    %877 = vmatpush2.bf16.msra.mxu0 0
    %878 = vmatprep.subr.bf16.mxu0 0
    %879 = vmatpush2.bf16.msra.mxu0 0
    %880 = vmatprep.subr.bf16.mxu0 0
    %881 = vmatpush2.bf16.msra.mxu0 0
    %882 = vmatprep.subr.bf16.mxu0 0
    %883 = vmatpush2.bf16.msra.mxu0 0
    %884 = vmatprep.subr.bf16.mxu0 0
    %885 = vmatpush2.bf16.msra.mxu0 0
    %886 = vmatprep.subr.bf16.mxu0 0
    %887 = vmatpush2.bf16.msra.mxu0 0
    %888 = vmatprep.subr.bf16.mxu0 0
    %889 = vmatpush2.bf16.msra.mxu0 0
    %890 = vmatprep.mubr.bf16.mxu0 0
    %891 = vmatmul.mubr.bf16.gmra.mxu0 %v856
    %v892 = vpop.f32.mrf.mxu0
    %v893 = vadd.f32 %v841, %v892
    %v894 = vpop.f32.mrf.mxu0
    %v895 = vpop.f32.mrf.mxu0
    %v896 = vpop.f32.mrf.mxu0
    %897 = vdwg.mxu0
    %898 = vst [vmem:[#allocation2] sm:$0x3] %v893
    // Predicated region
    $region30: #{mlp_forward.1} parent=1 // pred_check
      _
    $region31: #{mlp_forward.1} parent=1 // pred_check_branch
      %900 = sbr.rel (0) target = $region33
    $region32: #{mlp_forward.1} parent=1 // pred_region
      %s902 = ssub.s32 32, 32
      %903 = vsyncadd [#allocation3], %s902
      %s905 = sshll.u32 [#allocation2], 4
      %s906 = int_to_ptr.vmem [resolvable:$true] %s905
      %908 = dma.vmem_to_hbm [thread:$0]  %s906, 32, %s7, [#allocation3]
    $region33: #{mlp_forward.1} parent=1 // pred_fallthru
      _
    // Predicated region
    $region34: #{mlp_forward.1} parent=1 // pred_check
      _
    $region35: #{mlp_forward.1} parent=1 // pred_check_branch
      %910 = sbr.rel (0) target = $region37
    $region36: #{mlp_forward.1} parent=1 // pred_region
      %911 = dma.done [#allocation3], 32
    $region37: #{mlp_forward.1} parent=1 // pred_fallthru
      _
    %912 = vsyncpa [#allocation3], 1

</llo_original>
